<compile_context>
chip_gen: v7x
topology: tpu7x:2x2x1
jax: 0.10.0
libtpu: 0.0.40
codegen_flags: <defaults>
</compile_context>

<pallas_src>
import functools

import jax
import jax.numpy as jnp
from jax.experimental import pallas as pl
from jax.experimental.pallas import tpu as pltpu

IN_FEATURES = 3
OUT_FEATURES = 1

MAX_TILE_B = 128 * 1024             # lanes per grid step; multiple of 128
VMEM_LIMIT_BYTES = 32 * 1024 * 1024  # safe on v5e/v6e/v7x for the tile above
SMALL_BATCH_XLA_THRESHOLD = 4096    # below this, pure-XLA beats the Pallas path


def _round_up(n, m):
    return ((n + m - 1) // m) * m


def _choose_tile(batch):
    """Returns (tile_b, num_tiles).  No explicit padding: grid = cdiv(B, tile_b)
    and Pallas masks the partial edge block's writeback."""
    if batch <= 256:
        # Single full-array block (exempt from the (8,128) divisibility rule).
        return batch, 1
    # Aim for >= 2 tiles so v7x's two TensorCores both get work on the
    # "parallel" axis, capped at MAX_TILE_B lanes to stay inside the VMEM limit.
    tile_b = min(MAX_TILE_B, _round_up(pl.cdiv(batch, 2), 128))
    return tile_b, pl.cdiv(batch, tile_b)


def _linear_vpu_kernel(x_ref, w_ref, b_ref, y_ref, psum_ref, *, batch, tile_b):
    # x_ref:    (3, tile_b) f32 VMEM  -- batch on the lane axis.
    # w_ref:    (3,)  f32 SMEM scalars;  b_ref: (1,) f32 SMEM scalar.
    # y_ref:    (1, tile_b) f32 VMEM  -- lane-dense output row.
    # psum_ref: (8, 128)    f32 VMEM  -- this tile's masked partial sum (broadcast).
    i = pl.program_id(0)

    acc = w_ref[0] * x_ref[0:1, :]
    for f in range(1, IN_FEATURES):      # static unroll: 3 vmul + adds on the VPU
        acc = acc + w_ref[f] * x_ref[f:f + 1, :]
    y = acc + b_ref[0]
    y_ref[...] = y

    # Per-tile partial sum for the global mean.  Lanes beyond the valid batch
    # in the (possibly partial) edge tile hold stale/garbage input data and
    # MUST be masked out before summing (select, not multiply, so NaNs are safe).
    lane = jax.lax.broadcasted_iota(jnp.int32, (1, tile_b), 1)
    valid = lane < (batch - i * tile_b)
    tile_sum = jnp.sum(jnp.where(valid, y, 0.0))
    psum_ref[...] = tile_sum + jnp.zeros((8, 128), jnp.float32)


@jax.jit
def _forward_pallas(x, weight, bias):
    B = x.shape[0]
    tile_b, num_tiles = _choose_tile(B)

    # Batch on the lane axis: (B, 3) -> (3, B).  Under jit this is one fused copy.
    x_t = x.T.astype(jnp.float32)
    w_flat = weight.reshape(IN_FEATURES).astype(jnp.float32)   # (3,)  SMEM scalars
    b_flat = bias.reshape(OUT_FEATURES).astype(jnp.float32)    # (1,)  SMEM scalar

    kernel = functools.partial(_linear_vpu_kernel, batch=B, tile_b=tile_b)

    y_row, psum = pl.pallas_call(
        kernel,
        out_shape=(
            jax.ShapeDtypeStruct((OUT_FEATURES, B), jnp.float32),
            jax.ShapeDtypeStruct((8 * num_tiles, 128), jnp.float32),
        ),
        grid=(num_tiles,),
        in_specs=[
            pl.BlockSpec((IN_FEATURES, tile_b), lambda i: (0, i)),
            pl.BlockSpec(memory_space=pltpu.MemorySpace.SMEM),
            pl.BlockSpec(memory_space=pltpu.MemorySpace.SMEM),
        ],
        out_specs=[
            pl.BlockSpec((OUT_FEATURES, tile_b), lambda i: (0, i)),
            pl.BlockSpec((8, 128), lambda i: (i, 0)),
        ],
        compiler_params=pltpu.CompilerParams(
            dimension_semantics=("parallel",),   # batch tiles independent (v7x: 2 TCs)
            vmem_limit_bytes=VMEM_LIMIT_BYTES,
        ),
    )(x_t, w_flat, b_flat)

    y = y_row.reshape(B, OUT_FEATURES)            # (1,B)->(B,1): same flat layout
    partials = psum.reshape(num_tiles, 8, 128)[:, 0, 0]
    mean = jnp.sum(partials) / jnp.float32(B)     # divide by the *global* B
    return mean, y


@jax.jit
def _forward_xla(x, weight, bias):
    # Pure-XLA path for small batches: reads x once in its natural (B,3)
    # layout, no transpose pass, no kernel launch.
    y = x.astype(jnp.float32) @ weight.astype(jnp.float32).T + bias.astype(jnp.float32)
    return jnp.mean(y), y


def dummy_model_forward(x, weight, bias, *, force_pallas=False):
    """DummyModel.forward: y = fc(x); return (y.mean(), y)."""
    if force_pallas or x.shape[0] >= SMALL_BATCH_XLA_THRESHOLD:
        return _forward_pallas(x, weight, bias)
    return _forward_xla(x, weight, bias)


if __name__ == "__main__":
    key = jax.random.PRNGKey(0)
    kx, kw, kb = jax.random.split(key, 3)

    # Deterministic parameters (nn.Linear(3, 1): weight (1, 3), bias (1,))
    weight = jax.random.normal(kw, (OUT_FEATURES, IN_FEATURES), dtype=jnp.float32) * 0.5
    bias = jax.random.normal(kb, (OUT_FEATURES,), dtype=jnp.float32) * 0.1

    def ref(x):
        y = x @ weight.T + bias
        return jnp.mean(y), y

    # 1) Small batch: Pallas kernel (forced), single full-array block.
    B = 8
    x = jax.random.normal(kx, (B, IN_FEATURES), dtype=jnp.float32)
    mean_p, y_p = dummy_model_forward(x, weight, bias, force_pallas=True)
    jax.block_until_ready((mean_p, y_p))
    mean_r, y_r = ref(x)
    assert y_p.shape == (B, OUT_FEATURES)
    assert jnp.allclose(y_p, y_r, atol=1e-5), "small-batch y mismatch"
    assert jnp.allclose(mean_p, mean_r, atol=1e-5), "small-batch mean mismatch"

    # Dispatcher's small-batch XLA path gives the same answer.
    mean_x, y_x = dummy_model_forward(x, weight, bias)
    jax.block_until_ready((mean_x, y_x))
    assert jnp.allclose(y_x, y_r, atol=1e-5), "xla-path y mismatch"
    assert jnp.allclose(mean_x, mean_r, atol=1e-5), "xla-path mean mismatch"

    # 2) Batch that is NOT a tile multiple: exercises the multi-tile grid, the
    #    masked partial edge block (no jnp.pad anywhere), and the in-kernel
    #    masked partial sums for the mean.
    B2 = 5000
    x2 = jax.random.normal(kx, (B2, IN_FEATURES), dtype=jnp.float32)
    mean2, y2 = dummy_model_forward(x2, weight, bias, force_pallas=True)
    jax.block_until_ready((mean2, y2))
    mean2_r, y2_r = ref(x2)
    assert y2.shape == (B2, OUT_FEATURES)
    assert jnp.allclose(y2, y2_r, atol=1e-5), "tiled y mismatch"
    assert jnp.allclose(mean2, mean2_r, atol=1e-4), "tiled mean mismatch"

    print("KERNEL_OK")
</pallas_src>

<mosaic_0001>
module attributes {stable_mosaic.version = 11 : i64} {
  func.func @_linear_vpu_kernel(%arg0: i32, %arg1: memref<3x8xf32, #tpu.memory_space<vmem>>, %arg2: memref<3xf32, #tpu.memory_space<smem>>, %arg3: memref<1xf32, #tpu.memory_space<smem>>, %arg4: memref<1x8xf32, #tpu.memory_space<vmem>>, %arg5: memref<8x128xf32, #tpu.memory_space<vmem>>) attributes {dimension_semantics = [#tpu.dimension_semantics<parallel>], iteration_bounds = array<i64: 1>, scalar_prefetch = 0 : i64, scratch_operands = 0 : i64, tpu.core_type = #tpu.core_type<tc>, window_params = [{transform_indices = @transform_0, window_bounds = array<i64: 3, 8>}, {transform_indices = @transform_1, window_bounds = array<i64: 3>}, {transform_indices = @transform_2, window_bounds = array<i64: 1>}, {transform_indices = @transform_3, window_bounds = array<i64: 1, 8>}, {transform_indices = @transform_4, window_bounds = array<i64: 8, 128>}]} {
    %c0 = arith.constant 0 : index
    %0 = memref.load %arg2[%c0] : memref<3xf32, #tpu.memory_space<smem>>
    %c0_0 = arith.constant 0 : index
    %c0_1 = arith.constant 0 : index
    %1 = vector.load %arg1[%c0_0, %c0_1] : memref<3x8xf32, #tpu.memory_space<vmem>>, vector<1x8xf32>
    %2 = vector.broadcast %0 : f32 to vector<1x8xf32>
    %3 = arith.mulf %2, %1 : vector<1x8xf32>
    %c1 = arith.constant 1 : index
    %4 = memref.load %arg2[%c1] : memref<3xf32, #tpu.memory_space<smem>>
    %c1_2 = arith.constant 1 : index
    %c0_3 = arith.constant 0 : index
    %5 = vector.load %arg1[%c1_2, %c0_3] : memref<3x8xf32, #tpu.memory_space<vmem>>, vector<1x8xf32>
    %6 = vector.broadcast %4 : f32 to vector<1x8xf32>
    %7 = arith.mulf %6, %5 : vector<1x8xf32>
    %8 = arith.addf %3, %7 : vector<1x8xf32>
    %c2 = arith.constant 2 : index
    %9 = memref.load %arg2[%c2] : memref<3xf32, #tpu.memory_space<smem>>
    %c2_4 = arith.constant 2 : index
    %c0_5 = arith.constant 0 : index
    %10 = vector.load %arg1[%c2_4, %c0_5] : memref<3x8xf32, #tpu.memory_space<vmem>>, vector<1x8xf32>
    %11 = vector.broadcast %9 : f32 to vector<1x8xf32>
    %12 = arith.mulf %11, %10 : vector<1x8xf32>
    %13 = arith.addf %8, %12 : vector<1x8xf32>
    %c0_6 = arith.constant 0 : index
    %14 = memref.load %arg3[%c0_6] : memref<1xf32, #tpu.memory_space<smem>>
    %15 = vector.broadcast %14 : f32 to vector<1x8xf32>
    %16 = arith.addf %13, %15 : vector<1x8xf32>
    %c0_7 = arith.constant 0 : index
    %c0_8 = arith.constant 0 : index
    %17 = vector.load %arg4[%c0_7, %c0_8] : memref<1x8xf32, #tpu.memory_space<vmem>>, vector<1x8xf32>
    tpu.vector_store %arg4[%c0_7, %c0_8], %16 {strides = array<i32>} : memref<1x8xf32, #tpu.memory_space<vmem>>, vector<1x8xf32>,
    %18 = tpu.iota {dimensions = array<i32: 1>} : vector<1x8xi32>
    %c8_i32 = arith.constant 8 : i32
    %19 = arith.muli %arg0, %c8_i32 : i32
    %c8_i32_9 = arith.constant 8 : i32
    %20 = arith.subi %c8_i32_9, %19 : i32
    %21 = vector.broadcast %20 : i32 to vector<1x8xi32>
    %22 = arith.cmpi slt, %18, %21 : vector<1x8xi32>
    %cst = arith.constant 0.000000e+00 : f32
    %23 = vector.broadcast %cst : f32 to vector<1x8xf32>
    %24 = arith.select %22, %16, %23 : vector<1x8xi1>, vector<1x8xf32>
    %25 = vector.shape_cast %24 : vector<1x8xf32> to vector<1x1x8xf32>
    %cst_10 = arith.constant dense<0.000000e+00> : vector<1xf32>
    %26 = vector.multi_reduction <add>, %25, %cst_10 [1, 2] : vector<1x1x8xf32> to vector<1xf32>
    %27 = vector.shape_cast %26 : vector<1xf32> to vector<1x1x1xf32>
    %28 = vector.extract %27[0, 0, 0] : f32 from vector<1x1x1xf32>
    %cst_11 = arith.constant 0.000000e+00 : f32
    %29 = vector.broadcast %cst_11 : f32 to vector<8x128xf32>
    %30 = vector.broadcast %28 : f32 to vector<8x128xf32>
    %31 = arith.addf %30, %29 : vector<8x128xf32>
    %c0_12 = arith.constant 0 : index
    %c0_13 = arith.constant 0 : index
    %32 = vector.load %arg5[%c0_12, %c0_13] : memref<8x128xf32, #tpu.memory_space<vmem>>, vector<8x128xf32>
    tpu.vector_store %arg5[%c0_12, %c0_13], %31 {strides = array<i32>} : memref<8x128xf32, #tpu.memory_space<vmem>>, vector<8x128xf32>,
    return
  }
  func.func @transform_0(%arg0: i32) -> (i32, i32) {
    %c0_i32 = arith.constant 0 : i32
    %c0_i32_0 = arith.constant 0 : i32
    return %c0_i32, %arg0 : i32, i32
  }
  func.func @transform_1(%arg0: i32) -> i32 {
    %c0_i32 = arith.constant 0 : i32
    %c0_i32_0 = arith.constant 0 : i32
    return %c0_i32 : i32
  }
  func.func @transform_2(%arg0: i32) -> i32 {
    %c0_i32 = arith.constant 0 : i32
    %c0_i32_0 = arith.constant 0 : i32
    return %c0_i32 : i32
  }
  func.func @transform_3(%arg0: i32) -> (i32, i32) {
    %c0_i32 = arith.constant 0 : i32
    %c0_i32_0 = arith.constant 0 : i32
    return %c0_i32, %arg0 : i32, i32
  }
  func.func @transform_4(%arg0: i32) -> (i32, i32) {
    %c0_i32 = arith.constant 0 : i32
    %c0_i32_0 = arith.constant 0 : i32
    return %arg0, %c0_i32 : i32, i32
  }
}

</mosaic_0001>

<llo_original>
// kernel: _forward_pallas.1
$region0: #{_forward_pallas.1}
  #allocation0 [shape = 'u32[]', space=smem, size = 0x4, offset = 0x4, fixed_abs, tag = 'smem constant byte address 0x4 - core index']
  #allocation1 [shape = 'u32[144,128]{1,0:T(1,128)}', space=vmem, size = 0x12000, scoped, tag = 'internal scratch']
  #allocation2 [shape = 'f32[1]{0:T(128)S(6)}', space=smem, size = 0x200, scoped, tag = 'scoped memory for _forward_pallas.1']
  %s0 = inlined_call_operand.vmem [shape: f32[3,8], index: 0, kind: input, shape index: {}]
  %s1 = inlined_call_operand.vmem [shape: f32[3], index: 1, kind: input, shape index: {}]
  %s2 = inlined_call_operand.<no memory space> [shape: f32[1], index: 2, kind: input, shape index: {}]
  %s3 = inlined_call_operand.hbm [shape: f32[1,8], index: 3, kind: output, shape index: {0}]
  %s4 = inlined_call_operand.vmem [shape: f32[8,128], index: 4, kind: output, shape index: {1}]
  %5 = xla_tuple %s3, %s4
  %s6 = sld [smem:[#allocation0]]
  $region34: #{_forward_pallas.1} parent=0
    _
  %s8 = ssub.s32 1, %s6
  %s9 = scalar_select 0, %s8, %s6
  %10 = sst [smem:[#allocation2]] %s2
  $region1: #{_forward_pallas.1} parent=0
    #allocation3 [shape = 'u8[512]{0}', space=smem, size = 0x200, scoped, tag = 'input window, operand 1, single buffered']
    #allocation4 [shape = 's32[1]{0}', space=sflag, size = 0x4, scoped, tag = 'scoped memory for _forward_pallas.1']
    #allocation5 [shape = 's32[1]{0}', space=sflag, size = 0x4, scoped, tag = 'scoped memory for _forward_pallas.1']
    #allocation6 [shape = 'u8[512]{0}', space=vmem, size = 0x400, scoped, tag = 'output window, operand 0, single buffered']
    %11 = vsyncpa [#allocation5], 0
    %12 = vsyncpa [#allocation4], 0
    // Predicated region
    $region2: #{_forward_pallas.1} parent=1 // pred_check
      _
    $region3: #{_forward_pallas.1} parent=1 // pred_check_branch
      %14 = sbr.rel (0) target = $region5
    $region4: #{_forward_pallas.1} parent=1 // pred_region
      _
    $region5: #{_forward_pallas.1} parent=1 // pred_fallthru
      _
    // Predicated region
    $region6: #{_forward_pallas.1} parent=1 // pred_check
      _
    $region7: #{_forward_pallas.1} parent=1 // pred_check_branch
      %16 = sbr.rel (0) target = $region9
    $region8: #{_forward_pallas.1} parent=1 // pred_region
      %s18 = ssub.s32 16, 16
      %19 = vsyncadd [#allocation5], %s18
      %s21 = sshll.u32 %s1, 4
      %s22 = int_to_ptr.vmem [resolvable:$true] %s21
      %24 = dma.vmem_to_smem %s22, 16, [#allocation3], [#allocation5]
    $region9: #{_forward_pallas.1} parent=1 // pred_fallthru
      _
    // Predicated region
    $region10: #{_forward_pallas.1} parent=1 // pred_check
      _
    $region11: #{_forward_pallas.1} parent=1 // pred_check_branch
      %26 = sbr.rel (0) target = $region13
    $region12: #{_forward_pallas.1} parent=1 // pred_region
      _
    $region13: #{_forward_pallas.1} parent=1 // pred_fallthru
      _
    // Predicated region
    $region14: #{_forward_pallas.1} parent=1 // pred_check
      _
    $region15: #{_forward_pallas.1} parent=1 // pred_check_branch
      %28 = sbr.rel (0) target = $region17
    $region16: #{_forward_pallas.1} parent=1 // pred_region
      %29 = dma.done [#allocation5], 16
    $region17: #{_forward_pallas.1} parent=1 // pred_fallthru
      _
    %30 = sfence
    %s31 = sld [smem:[#allocation3]]
    %v32 = vld [vmem:[%s0] sm:$0x1]
    %v33 = vstv %s31
    %v34 = vmul.f32 %v33, %v32
    %s35 = sld [smem:[#allocation3 + $0x1]]
    %v36 = vld [vmem:[%s0 + $0x1] sm:$0x1]
    %v37 = vstv %s35
    %v38 = vmul.f32 %v37, %v36
    %v39 = vadd.f32 %v34, %v38
    %s40 = sld [smem:[#allocation3 + $0x2]]
    %v41 = vld [vmem:[%s0 + $0x2] sm:$0x1]
    %v42 = vstv %s40
    %v43 = vmul.f32 %v42, %v41
    %v44 = vadd.f32 %v39, %v43
    %s45 = sld [smem:[#allocation2]]
    %v46 = vstv %s45
    %v47 = vadd.f32 %v44, %v46
    %vm48 = vcmask 57344
    %49 = vst.msk [vmem:[#allocation6] sm:$0x1] %vm48, %v47
    %v50 = vlaneseq
    %v51 = vand.u32 %v50, 127
    %s52 = smul.u32 0, 8
    %s53 = ssub.s32 8, %s52
    %v54 = vstv %s53
    %vm55 = vcmp.lt.s32.totalorder %v51, %v54
    %v56 = vsel %vm55, %v47, 0.0
    %v57 = vsel %vm48, %v56, 0.0
    %58 = vadd.xlane.f32.xlu0 %v57
    %v59 = vpop.xlane.xlu0 %58
    %v60 = vrot.slane %v59, 4
    %v61 = vadd.f32 %v59, %v60
    %v62 = vrot.slane %v61, 2
    %v63 = vadd.f32 %v61, %v62
    %v64 = vrot.slane %v63, 1
    %v65 = vadd.f32 %v63, %v64
    %s66 = vtos %v65
    %v67 = vstv %s66
    %v68 = vadd.f32 %v67, 0.0
    %69 = vst [vmem:[%s4] sm:$0xff] %v68
    // Predicated region
    $region18: #{_forward_pallas.1} parent=1 // pred_check
      _
    $region19: #{_forward_pallas.1} parent=1 // pred_check_branch
      %71 = sbr.rel (0) target = $region21
    $region20: #{_forward_pallas.1} parent=1 // pred_region
      %s73 = ssub.s32 16, 16
      %74 = vsyncadd [#allocation4], %s73
      %s76 = sshll.u32 [#allocation6], 4
      %s77 = int_to_ptr.vmem [resolvable:$true] %s76
      %79 = dma.vmem_to_hbm [thread:$0]  %s77, 16, %s3, [#allocation4]
    $region21: #{_forward_pallas.1} parent=1 // pred_fallthru
      _
    // Predicated region
    $region22: #{_forward_pallas.1} parent=1 // pred_check
      _
    $region23: #{_forward_pallas.1} parent=1 // pred_check_branch
      %81 = sbr.rel (0) target = $region25
    $region24: #{_forward_pallas.1} parent=1 // pred_region
      _
    $region25: #{_forward_pallas.1} parent=1 // pred_fallthru
      _
    // Predicated region
    $region26: #{_forward_pallas.1} parent=1 // pred_check
      _
    $region27: #{_forward_pallas.1} parent=1 // pred_check_branch
      %83 = sbr.rel (0) target = $region29
    $region28: #{_forward_pallas.1} parent=1 // pred_region
      %84 = dma.done [#allocation4], 16
    $region29: #{_forward_pallas.1} parent=1 // pred_fallthru
      _
    // Predicated region
    $region30: #{_forward_pallas.1} parent=1 // pred_check
      _
    $region31: #{_forward_pallas.1} parent=1 // pred_check_branch
      %86 = sbr.rel (0) target = $region33
    $region32: #{_forward_pallas.1} parent=1 // pred_region
      _
    $region33: #{_forward_pallas.1} parent=1 // pred_fallthru
      _
    %87 = vsyncpa [#allocation4], 1
    %88 = vsyncpa [#allocation5], 1

</llo_original>
